<compile_context>
chip_gen: v6e
topology: v6e:2x2x1
jax: 0.10.0
libtpu: 0.0.40
codegen_flags: <defaults>
</compile_context>

<pallas_src>
import jax
import jax.numpy as jnp
from jax import lax
from jax.experimental import pallas as pl
from jax.experimental.pallas import tpu as pltpu


def self_attention_kernel(gamma_ref, x_ref, xq_ref, wq_ref, bq_ref,
                          wk_ref, bk_ref, wv_ref, bv_ref, o_ref,
                          k_sc, v_sc):
    # x_ref : (1, C, N)  full spatial extent (keys / values), resident per batch
    # xq_ref: (1, C, TQ) query-position tile for this grid step
    # k_sc  : (C8, N) bf16 VMEM scratch  (cached key projection)
    # v_sc  : (C,  N) bf16 VMEM scratch  (cached value projection)
    qt = pl.program_id(1)

    # --- per-batch-element init: project keys / values once, cache in VMEM ---
    @pl.when(qt == 0)
    def _():
        x_kv_bf = x_ref[0].astype(jnp.bfloat16)                        # (C, N)
        wk = wk_ref[...].astype(jnp.bfloat16)                          # (C8, C)
        wv = wv_ref[...].astype(jnp.bfloat16)                          # (C,  C)
        # 1x1 convs == channel matmuls; bf16 MXU operands, f32 accumulation,
        # biases added in f32 (broadcast over spatial positions).
        k = jnp.dot(wk, x_kv_bf, preferred_element_type=jnp.float32) + bk_ref[...]
        v = jnp.dot(wv, x_kv_bf, preferred_element_type=jnp.float32) + bv_ref[...]
        k_sc[...] = k.astype(jnp.bfloat16)                             # (C8, N)
        v_sc[...] = v.astype(jnp.bfloat16)                             # (C,  N)

    # --- per-query-tile work ---
    x_q = xq_ref[0]                                                    # (C, TQ) f32
    wq = wq_ref[...].astype(jnp.bfloat16)                              # (C8, C)
    q = jnp.dot(wq, x_q.astype(jnp.bfloat16),
                preferred_element_type=jnp.float32) + bq_ref[...]      # (C8, TQ)

    # energy[i, j] = <q[:, i], k[:, j]>  (torch: bmm(proj_query, proj_key)).
    # Contract the C8 axis of both operands directly -- no k.T materialization.
    energy = lax.dot_general(
        q.astype(jnp.bfloat16), k_sc[...],
        (((0,), (0,)), ((), ())),
        preferred_element_type=jnp.float32)                            # (TQ, N)

    # Numerically-stable softmax over keys with deferred normalization:
    # exp in f32 on the EUP, approx reciprocal instead of a divide.
    energy = energy - jnp.max(energy, axis=-1, keepdims=True)
    p = jnp.exp(energy)                                                # (TQ, N) f32
    inv = pl.reciprocal(jnp.sum(p, axis=-1, keepdims=True), approx=True)  # (TQ, 1)
    p_bf = (p * inv).astype(jnp.bfloat16)                              # normalized probs

    # out[c, i] = sum_j v[c, j] * attn[i, j]  (== torch.bmm(proj_value, attention^T))
    out = lax.dot_general(
        v_sc[...], p_bf,
        (((1,), (1,)), ((), ())),
        preferred_element_type=jnp.float32)                            # (C, TQ)

    gamma = gamma_ref[0, 0]
    o_ref[0] = gamma * out + x_q                                       # lane-dense store


def self_attention(x_nchw, params):
    """x_nchw: (B, C, H, W) float32.  Returns (B, C, H, W)."""
    wq, bq, wk, bk, wv, bv, gamma = params
    B, C, H, W = x_nchw.shape
    N = H * W
    C8 = C // 8

    # NCHW -> (B, C, N) is a pure reshape: no HBM transpose passes.
    x_bcn = x_nchw.reshape(B, C, N).astype(jnp.float32)

    # Query tiling (flash-style score tile of shape (TQ, N)); full-N fallback
    # keeps arbitrary spatial sizes legal w.r.t. the (8, 128) block constraint.
    TQ = 128 if N % 128 == 0 else N
    num_q_tiles = N // TQ

    # K/V projections now counted once per batch element (cached in scratch).
    flops = int(B * (2 * N * C * (2 * C8 + C) + 2 * N * N * (C8 + C)))
    bytes_accessed = int(4 * (2 * B * C * N + 2 * C8 * C + C * C + 2 * C8 + C + 1))

    out_bcn = pl.pallas_call(
        self_attention_kernel,
        out_shape=jax.ShapeDtypeStruct((B, C, N), jnp.float32),
        grid=(B, num_q_tiles),
        in_specs=[
            pl.BlockSpec(memory_space=pltpu.MemorySpace.SMEM),       # gamma (1, 1)
            pl.BlockSpec((1, C, N), lambda b, qt: (b, 0, 0)),        # x (keys/values)
            pl.BlockSpec((1, C, TQ), lambda b, qt: (b, 0, qt)),      # x (query tile)
            pl.BlockSpec((C8, C), lambda b, qt: (0, 0)),             # wq
            pl.BlockSpec((C8, 1), lambda b, qt: (0, 0)),             # bq
            pl.BlockSpec((C8, C), lambda b, qt: (0, 0)),             # wk
            pl.BlockSpec((C8, 1), lambda b, qt: (0, 0)),             # bk
            pl.BlockSpec((C, C), lambda b, qt: (0, 0)),              # wv
            pl.BlockSpec((C, 1), lambda b, qt: (0, 0)),              # bv
        ],
        out_specs=pl.BlockSpec((1, C, TQ), lambda b, qt: (b, 0, qt)),
        scratch_shapes=[
            pltpu.VMEM((C8, N), jnp.bfloat16),                       # cached K
            pltpu.VMEM((C, N), jnp.bfloat16),                        # cached V
        ],
        compiler_params=pltpu.CompilerParams(
            # qt must stay sequential per batch element (K/V scratch caching);
            # batch axis stays parallel for megacore sharding.
            dimension_semantics=("parallel", "arbitrary"),
            vmem_limit_bytes=48 * 1024 * 1024,
        ),
        cost_estimate=pl.CostEstimate(
            flops=flops,
            transcendentals=int(B * N * N),
            bytes_accessed=bytes_accessed),
    )(gamma, x_bcn, x_bcn, wq, bq, wk, bk, wv, bv)

    # (B, C, N) -> NCHW is again a free reshape.
    return out_bcn.reshape(B, C, H, W)


def make_params(key, C):
    """Deterministic params matching the module's shapes (channels-first).

    Conv2d(C, Cout, 1) weight (Cout, C, 1, 1) is stored as (Cout, C) so the
    1x1 conv is W @ X with X = (C, N); bias is (Cout, 1).
    """
    C8 = C // 8
    k = jax.random.split(key, 6)
    wq = jax.random.normal(k[0], (C8, C), jnp.float32) * 0.1
    bq = jax.random.normal(k[1], (C8, 1), jnp.float32) * 0.05
    wk = jax.random.normal(k[2], (C8, C), jnp.float32) * 0.1
    bk = jax.random.normal(k[3], (C8, 1), jnp.float32) * 0.05
    wv = jax.random.normal(k[4], (C, C), jnp.float32) * 0.1
    bv = jax.random.normal(k[5], (C, 1), jnp.float32) * 0.05
    # PyTorch inits gamma to 0 (output == x); use a nonzero value so the
    # attention path is actually exercised by the check.
    gamma = jnp.full((1, 1), 0.5, jnp.float32)
    return (wq, bq, wk, bk, wv, bv, gamma)


def reference(x_nchw, params):
    """Pure-JAX f32 reference mirroring the PyTorch forward exactly."""
    wq, bq, wk, bk, wv, bv, gamma = params
    B, C, H, W = x_nchw.shape
    N = H * W
    X = x_nchw.reshape(B, C, N)                                  # (B, C, N)
    q = jnp.einsum('oc,bcn->bon', wq, X) + bq[None]              # (B, C8, N)
    k = jnp.einsum('oc,bcn->bon', wk, X) + bk[None]              # (B, C8, N)
    v = jnp.einsum('oc,bcn->bon', wv, X) + bv[None]              # (B, C,  N)
    energy = jnp.einsum('bci,bcj->bij', q, k)                    # (B, N, N)
    attn = jax.nn.softmax(energy, axis=-1)
    out = jnp.einsum('bcj,bij->bci', v, attn)                    # (B, C, N)
    out = gamma[0, 0] * out + X
    return out.reshape(B, C, H, W)


if __name__ == "__main__":
    B, C, H, W = 2, 32, 16, 16   # C >= 8 so C // 8 >= 1; N = 256 -> 2 query tiles
    key = jax.random.PRNGKey(0)
    kx, kp = jax.random.split(key)
    x = jax.random.normal(kx, (B, C, H, W), jnp.float32)
    params = make_params(kp, C)

    out = self_attention(x, params)
    out = jax.block_until_ready(out)
    assert out.shape == (B, C, H, W)

    ref = reference(x, params)
    # bf16 MXU operands + approx reciprocal vs an f32 reference -> ~1e-2 tolerance.
    err = float(jnp.max(jnp.abs(out - ref)))
    assert jnp.allclose(out, ref, rtol=2e-2, atol=2e-2), f"mismatch vs reference (max abs err {err})"
    print("KERNEL_OK")
</pallas_src>

<mosaic_0001>
module attributes {stable_mosaic.version = 11 : i64} {
  func.func @self_attention_kernel(%arg0: i32, %arg1: i32, %arg2: memref<1x1xf32, #tpu.memory_space<smem>>, %arg3: memref<1x32x256xf32, #tpu.memory_space<vmem>>, %arg4: memref<1x32x128xf32, #tpu.memory_space<vmem>>, %arg5: memref<4x32xf32, #tpu.memory_space<vmem>>, %arg6: memref<4x1xf32, #tpu.memory_space<vmem>>, %arg7: memref<4x32xf32, #tpu.memory_space<vmem>>, %arg8: memref<4x1xf32, #tpu.memory_space<vmem>>, %arg9: memref<32x32xf32, #tpu.memory_space<vmem>>, %arg10: memref<32x1xf32, #tpu.memory_space<vmem>>, %arg11: memref<1x32x128xf32, #tpu.memory_space<vmem>>, %arg12: memref<4x256xbf16, #tpu.memory_space<vmem>>, %arg13: memref<32x256xbf16, #tpu.memory_space<vmem>>) attributes {dimension_semantics = [#tpu.dimension_semantics<parallel>, #tpu.dimension_semantics<arbitrary>], iteration_bounds = array<i64: 2, 2>, scalar_prefetch = 0 : i64, scratch_operands = 2 : i64, tpu.core_type = #tpu.core_type<tc>, window_params = [{transform_indices = @transform_0, window_bounds = array<i64: 1, 1>}, {transform_indices = @transform_1, window_bounds = array<i64: 1, 32, 256>}, {transform_indices = @transform_2, window_bounds = array<i64: 1, 32, 128>}, {pipeline_mode = #tpu.pipeline_mode<synchronous>, transform_indices = @transform_3, window_bounds = array<i64: 4, 32>}, {pipeline_mode = #tpu.pipeline_mode<synchronous>, transform_indices = @transform_4, window_bounds = array<i64: 4, 1>}, {pipeline_mode = #tpu.pipeline_mode<synchronous>, transform_indices = @transform_5, window_bounds = array<i64: 4, 32>}, {pipeline_mode = #tpu.pipeline_mode<synchronous>, transform_indices = @transform_6, window_bounds = array<i64: 4, 1>}, {pipeline_mode = #tpu.pipeline_mode<synchronous>, transform_indices = @transform_7, window_bounds = array<i64: 32, 32>}, {pipeline_mode = #tpu.pipeline_mode<synchronous>, transform_indices = @transform_8, window_bounds = array<i64: 32, 1>}, {transform_indices = @transform_9, window_bounds = array<i64: 1, 32, 128>}]} {
    %c0_i32 = arith.constant 0 : i32
    %0 = arith.cmpi eq, %arg1, %c0_i32 : i32
    %1 = arith.extui %0 : i1 to i32
    %c0_i32_0 = arith.constant 0 : i32
    %2 = arith.cmpi ne, %1, %c0_i32_0 : i32
    scf.if %2 {
      %c0_20 = arith.constant 0 : index
      %c0_21 = arith.constant 0 : index
      %c0_22 = arith.constant 0 : index
      %35 = vector.load %arg3[%c0_20, %c0_21, %c0_22] : memref<1x32x256xf32, #tpu.memory_space<vmem>>, vector<1x32x256xf32>
      %36 = vector.shape_cast %35 : vector<1x32x256xf32> to vector<32x256xf32>
      %37 = arith.truncf %36 : vector<32x256xf32> to vector<32x256xbf16>
      %c0_23 = arith.constant 0 : index
      %c0_24 = arith.constant 0 : index
      %38 = vector.load %arg7[%c0_23, %c0_24] : memref<4x32xf32, #tpu.memory_space<vmem>>, vector<4x32xf32>
      %39 = arith.truncf %38 : vector<4x32xf32> to vector<4x32xbf16>
      %c0_25 = arith.constant 0 : index
      %c0_26 = arith.constant 0 : index
      %40 = vector.load %arg9[%c0_25, %c0_26] : memref<32x32xf32, #tpu.memory_space<vmem>>, vector<32x32xf32>
      %41 = arith.truncf %40 : vector<32x32xf32> to vector<32x32xbf16>
      %cst_27 = arith.constant dense<0.000000e+00> : vector<4x256xf32>
      %42 = tpu.matmul %39, %37, %cst_27 {dimension_numbers = #tpu.dot_dimension_numbers<[1], [0], [0], [1], [0, 0, 1, 1], [], []>} : vector<4x32xbf16>, vector<32x256xbf16>, vector<4x256xf32> -> vector<4x256xf32>
      %c0_28 = arith.constant 0 : index
      %c0_29 = arith.constant 0 : index
      %43 = vector.load %arg8[%c0_28, %c0_29] : memref<4x1xf32, #tpu.memory_space<vmem>>, vector<4x1xf32>
      %44 = vector.broadcast %43 : vector<4x1xf32> to vector<4x256xf32>
      %45 = arith.addf %42, %44 : vector<4x256xf32>
      %cst_30 = arith.constant dense<0.000000e+00> : vector<32x256xf32>
      %46 = tpu.matmul %41, %37, %cst_30 {dimension_numbers = #tpu.dot_dimension_numbers<[1], [0], [0], [1], [0, 0, 1, 1], [], []>} : vector<32x32xbf16>, vector<32x256xbf16>, vector<32x256xf32> -> vector<32x256xf32>
      %c0_31 = arith.constant 0 : index
      %c0_32 = arith.constant 0 : index
      %47 = vector.load %arg10[%c0_31, %c0_32] : memref<32x1xf32, #tpu.memory_space<vmem>>, vector<32x1xf32>
      %48 = vector.broadcast %47 : vector<32x1xf32> to vector<32x256xf32>
      %49 = arith.addf %46, %48 : vector<32x256xf32>
      %50 = arith.truncf %45 : vector<4x256xf32> to vector<4x256xbf16>
      %c0_33 = arith.constant 0 : index
      %c0_34 = arith.constant 0 : index
      %51 = vector.load %arg12[%c0_33, %c0_34] : memref<4x256xbf16, #tpu.memory_space<vmem>>, vector<4x256xbf16>
      tpu.vector_store %arg12[%c0_33, %c0_34], %50 {strides = array<i32>} : memref<4x256xbf16, #tpu.memory_space<vmem>>, vector<4x256xbf16>,
      %52 = arith.truncf %49 : vector<32x256xf32> to vector<32x256xbf16>
      %c0_35 = arith.constant 0 : index
      %c0_36 = arith.constant 0 : index
      %53 = vector.load %arg13[%c0_35, %c0_36] : memref<32x256xbf16, #tpu.memory_space<vmem>>, vector<32x256xbf16>
      tpu.vector_store %arg13[%c0_35, %c0_36], %52 {strides = array<i32>} : memref<32x256xbf16, #tpu.memory_space<vmem>>, vector<32x256xbf16>,
    } else {
    }
    %c0 = arith.constant 0 : index
    %c0_1 = arith.constant 0 : index
    %c0_2 = arith.constant 0 : index
    %3 = vector.load %arg4[%c0, %c0_1, %c0_2] : memref<1x32x128xf32, #tpu.memory_space<vmem>>, vector<1x32x128xf32>
    %4 = vector.shape_cast %3 : vector<1x32x128xf32> to vector<32x128xf32>
    %c0_3 = arith.constant 0 : index
    %c0_4 = arith.constant 0 : index
    %5 = vector.load %arg5[%c0_3, %c0_4] : memref<4x32xf32, #tpu.memory_space<vmem>>, vector<4x32xf32>
    %6 = arith.truncf %5 : vector<4x32xf32> to vector<4x32xbf16>
    %7 = arith.truncf %4 : vector<32x128xf32> to vector<32x128xbf16>
    %cst = arith.constant dense<0.000000e+00> : vector<4x128xf32>
    %8 = tpu.matmul %6, %7, %cst {dimension_numbers = #tpu.dot_dimension_numbers<[1], [0], [0], [1], [0, 0, 1, 1], [], []>} : vector<4x32xbf16>, vector<32x128xbf16>, vector<4x128xf32> -> vector<4x128xf32>
    %c0_5 = arith.constant 0 : index
    %c0_6 = arith.constant 0 : index
    %9 = vector.load %arg6[%c0_5, %c0_6] : memref<4x1xf32, #tpu.memory_space<vmem>>, vector<4x1xf32>
    %10 = vector.broadcast %9 : vector<4x1xf32> to vector<4x128xf32>
    %11 = arith.addf %8, %10 : vector<4x128xf32>
    %12 = arith.truncf %11 : vector<4x128xf32> to vector<4x128xbf16>
    %c0_7 = arith.constant 0 : index
    %c0_8 = arith.constant 0 : index
    %13 = vector.load %arg12[%c0_7, %c0_8] : memref<4x256xbf16, #tpu.memory_space<vmem>>, vector<4x256xbf16>
    %cst_9 = arith.constant dense<0.000000e+00> : vector<128x256xf32>
    %14 = tpu.matmul %12, %13, %cst_9 {dimension_numbers = #tpu.dot_dimension_numbers<[0], [0], [1], [1], [0, 1, 1, 1], [], []>} : vector<4x128xbf16>, vector<4x256xbf16>, vector<128x256xf32> -> vector<128x256xf32>
    %cst_10 = arith.constant dense<0xFF800000> : vector<128xf32>
    %15 = vector.multi_reduction <maximumf>, %14, %cst_10 [1] : vector<128x256xf32> to vector<128xf32>
    %16 = vector.shape_cast %15 : vector<128xf32> to vector<128x1xf32>
    %17 = vector.broadcast %16 : vector<128x1xf32> to vector<128x256xf32>
    %18 = arith.subf %14, %17 : vector<128x256xf32>
    %19 = math.exp %18 : vector<128x256xf32>
    %cst_11 = arith.constant dense<0.000000e+00> : vector<128xf32>
    %20 = vector.multi_reduction <add>, %19, %cst_11 [1] : vector<128x256xf32> to vector<128xf32>
    %21 = vector.shape_cast %20 : vector<128xf32> to vector<128x1xf32>
    %22 = tpu.reciprocal %21 {approx = true} : vector<128x1xf32> -> vector<128x1xf32>
    %23 = vector.broadcast %22 : vector<128x1xf32> to vector<128x256xf32>
    %24 = arith.mulf %19, %23 : vector<128x256xf32>
    %25 = arith.truncf %24 : vector<128x256xf32> to vector<128x256xbf16>
    %c0_12 = arith.constant 0 : index
    %c0_13 = arith.constant 0 : index
    %26 = vector.load %arg13[%c0_12, %c0_13] : memref<32x256xbf16, #tpu.memory_space<vmem>>, vector<32x256xbf16>
    %cst_14 = arith.constant dense<0.000000e+00> : vector<32x128xf32>
    %27 = tpu.matmul %26, %25, %cst_14 {dimension_numbers = #tpu.dot_dimension_numbers<[1], [1], [0], [0], [0, 0, 1, 0], [], []>} : vector<32x256xbf16>, vector<128x256xbf16>, vector<32x128xf32> -> vector<32x128xf32>
    %c0_15 = arith.constant 0 : index
    %c0_16 = arith.constant 0 : index
    %28 = memref.load %arg2[%c0_15, %c0_16] : memref<1x1xf32, #tpu.memory_space<smem>>
    %29 = vector.broadcast %28 : f32 to vector<32x128xf32>
    %30 = arith.mulf %29, %27 : vector<32x128xf32>
    %31 = arith.addf %30, %4 : vector<32x128xf32>
    %c0_17 = arith.constant 0 : index
    %c0_18 = arith.constant 0 : index
    %c0_19 = arith.constant 0 : index
    %32 = vector.load %arg11[%c0_17, %c0_18, %c0_19] : memref<1x32x128xf32, #tpu.memory_space<vmem>>, vector<1x32x128xf32>
    %33 = vector.shape_cast %32 : vector<1x32x128xf32> to vector<32x128xf32>
    %34 = vector.shape_cast %31 : vector<32x128xf32> to vector<1x32x128xf32>
    tpu.vector_store %arg11[%c0_17, %c0_18, %c0_19], %34 {strides = array<i32>} : memref<1x32x128xf32, #tpu.memory_space<vmem>>, vector<1x32x128xf32>,
    return
  }
  func.func @transform_0(%arg0: i32, %arg1: i32) -> (i32, i32) {
    %c0_i32 = arith.constant 0 : i32
    %c0_i32_0 = arith.constant 0 : i32
    %c0_i32_1 = arith.constant 0 : i32
    return %c0_i32, %c0_i32_0 : i32, i32
  }
  func.func @transform_1(%arg0: i32, %arg1: i32) -> (i32, i32, i32) {
    %c0_i32 = arith.constant 0 : i32
    %c0_i32_0 = arith.constant 0 : i32
    %c0_i32_1 = arith.constant 0 : i32
    return %arg0, %c0_i32, %c0_i32_0 : i32, i32, i32
  }
  func.func @transform_2(%arg0: i32, %arg1: i32) -> (i32, i32, i32) {
    %c0_i32 = arith.constant 0 : i32
    %c0_i32_0 = arith.constant 0 : i32
    return %arg0, %c0_i32, %arg1 : i32, i32, i32
  }
  func.func @transform_3(%arg0: i32, %arg1: i32) -> (i32, i32) {
    %c0_i32 = arith.constant 0 : i32
    %c0_i32_0 = arith.constant 0 : i32
    %c0_i32_1 = arith.constant 0 : i32
    return %c0_i32, %c0_i32_0 : i32, i32
  }
  func.func @transform_4(%arg0: i32, %arg1: i32) -> (i32, i32) {
    %c0_i32 = arith.constant 0 : i32
    %c0_i32_0 = arith.constant 0 : i32
    %c0_i32_1 = arith.constant 0 : i32
    return %c0_i32, %c0_i32_0 : i32, i32
  }
  func.func @transform_5(%arg0: i32, %arg1: i32) -> (i32, i32) {
    %c0_i32 = arith.constant 0 : i32
    %c0_i32_0 = arith.constant 0 : i32
    %c0_i32_1 = arith.constant 0 : i32
    return %c0_i32, %c0_i32_0 : i32, i32
  }
  func.func @transform_6(%arg0: i32, %arg1: i32) -> (i32, i32) {
    %c0_i32 = arith.constant 0 : i32
    %c0_i32_0 = arith.constant 0 : i32
    %c0_i32_1 = arith.constant 0 : i32
    return %c0_i32, %c0_i32_0 : i32, i32
  }
  func.func @transform_7(%arg0: i32, %arg1: i32) -> (i32, i32) {
    %c0_i32 = arith.constant 0 : i32
    %c0_i32_0 = arith.constant 0 : i32
    %c0_i32_1 = arith.constant 0 : i32
    return %c0_i32, %c0_i32_0 : i32, i32
  }
  func.func @transform_8(%arg0: i32, %arg1: i32) -> (i32, i32) {
    %c0_i32 = arith.constant 0 : i32
    %c0_i32_0 = arith.constant 0 : i32
    %c0_i32_1 = arith.constant 0 : i32
    return %c0_i32, %c0_i32_0 : i32, i32
  }
  func.func @transform_9(%arg0: i32, %arg1: i32) -> (i32, i32, i32) {
    %c0_i32 = arith.constant 0 : i32
    %c0_i32_0 = arith.constant 0 : i32
    return %arg0, %c0_i32, %arg1 : i32, i32, i32
  }
}

</mosaic_0001>

<llo_original>
// kernel: tpu_custom_call.1
$region0: #{tpu_custom_call.1}
  #allocation0 [shape = 'u32[]', space=smem, size = 0x4, offset = 0x4, fixed_abs, tag = 'smem constant byte address 0x4 - core index']
  #allocation1 [shape = 'u32[144,128]{1,0:T(1,128)}', space=vmem, size = 0x12000, scoped, tag = 'internal scratch']
  #allocation2 [shape = 'bf16[4,256]{1,0:T(4,128)(2,1)}', space=vmem, size = 0x800, scoped, tag = 'scratch operand']
  #allocation3 [shape = 'bf16[32,256]{1,0:T(8,128)(2,1)}', space=vmem, size = 0x4000, scoped, tag = 'scratch operand']
  #allocation4 [shape = 'f32[1,1]{1,0:T(1,128)S(6)}', space=smem, size = 0x200, scoped, tag = 'scoped memory for tpu_custom_call.1']
  %s0 = inlined_call_operand.<no memory space> [shape: f32[1,1], index: 0, kind: input, shape index: {}]
  %s1 = inlined_call_operand.hbm [shape: f32[2,32,256], index: 1, kind: input, shape index: {}]
  %s2 = inlined_call_operand.hbm [shape: f32[2,32,256], index: 2, kind: input, shape index: {}]
  %s3 = inlined_call_operand.vmem [shape: f32[4,32], index: 3, kind: input, shape index: {}]
  %s4 = inlined_call_operand.vmem [shape: f32[4,1], index: 4, kind: input, shape index: {}]
  %s5 = inlined_call_operand.vmem [shape: f32[4,32], index: 5, kind: input, shape index: {}]
  %s6 = inlined_call_operand.vmem [shape: f32[4,1], index: 6, kind: input, shape index: {}]
  %s7 = inlined_call_operand.vmem [shape: f32[32,32], index: 7, kind: input, shape index: {}]
  %s8 = inlined_call_operand.vmem [shape: f32[32,1], index: 8, kind: input, shape index: {}]
  %s9 = inlined_call_operand.hbm [shape: f32[2,32,256], index: 9, kind: output, shape index: {}]
  %s10 = sld [smem:[#allocation0]]
  $region81: #{tpu_custom_call.1} parent=0
    _
  %s12 = ssub.s32 1, %s10
  %s13 = scalar_select 0, %s12, %s10
  %14 = sst [smem:[#allocation4]] %s0
  $region1: #{tpu_custom_call.1} parent=0
    #allocation5 [shape = 'u8[65536]{0}', space=vmem, size = 0x10000, scoped, tag = 'input window, operand 1']
    #allocation6 [shape = 's32[2]{0}', space=sflag, size = 0x8, scoped, tag = 'scoped memory for tpu_custom_call.1']
    #allocation7 [shape = 's32[2]{0}', space=sflag, size = 0x8, scoped, tag = 'scoped memory for tpu_custom_call.1']
    #allocation8 [shape = 'u8[32768]{0}', space=vmem, size = 0x8000, scoped, tag = 'input window, operand 2']
    #allocation9 [shape = 's32[2]{0}', space=sflag, size = 0x8, scoped, tag = 'scoped memory for tpu_custom_call.1']
    #allocation10 [shape = 'u8[32768]{0}', space=vmem, size = 0x8000, scoped, tag = 'output window, operand 0']
    %15 = vsyncpa [#allocation6], 0
    %s16 = scalar_lea.sflag [#allocation6], 1
    %17 = vsyncpa %s16, 0
    %18 = vsyncpa [#allocation9], 0
    %s19 = scalar_lea.sflag [#allocation9], 1
    %20 = vsyncpa %s19, 0
    %21 = vsyncpa [#allocation7], 0
    %s22 = scalar_lea.sflag [#allocation7], 1
    %23 = vsyncpa %s22, 0
    loop: start=0, step=1, limit=6
    $region2: #{tpu_custom_call.1} parent=1 // loop_pre_header
      _
    $region3: #{tpu_custom_call.1} parent=1 // loop_header
      %s25 = sphi 0, %s29
      %p26 = scmp.ge.s32.totalorder %s25, 6
      %s32 = sphi 0, %s44
      %s33 = sphi 0, %s40
      %s34 = sphi 0, %s32
      %s35 = sphi 0, %s33
      %s36 = sphi 0, %s34
      %s37 = sphi 0, %s35
      %s45 = sphi 0, %s45
      %s47 = sphi 0, %s45
      %s48 = sphi 0, %s47
      %s62 = sphi 0, %s48
      %s68 = sphi 0, %s70
      %s71 = sphi 0, %s68
      %s72 = sphi 0, %s71
      %s88 = sphi 0, %s72
      %s96 = sphi 0, %s98
      %s99 = sphi 0, %s96
      %s100 = sphi 0, %s99
      %s116 = sphi 0, %s100
      %s120 = sphi 0, %s120
      %s122 = sphi 0, %s120
      %s123 = sphi 0, %s122
      %s137 = sphi 0, %s123
      %s141 = sphi 0, %s141
      %s143 = sphi 0, %s141
      %s144 = sphi 0, %s143
      %s158 = sphi 0, %s144
      %s162 = sphi 0, %s162
      %s164 = sphi 0, %s162
      %s165 = sphi 0, %s164
      %s179 = sphi 0, %s165
      %s183 = sphi 0, %s183
      %s185 = sphi 0, %s183
      %s186 = sphi 0, %s185
      %s200 = sphi 0, %s186
      %s204 = sphi 0, %s204
      %s206 = sphi 0, %s204
      %s207 = sphi 0, %s206
      %s221 = sphi 0, %s207
      %s225 = sphi 0, %s225
      %s227 = sphi 0, %s225
      %s228 = sphi 0, %s227
      %s242 = sphi 0, %s228
      %s250 = sphi 0, %s252
      %s253 = sphi 0, %s250
      %s254 = sphi 0, %s253
      %s270 = sphi 0, %s254
    $region4: #{tpu_custom_call.1} parent=1 // loop_header_branch
      %28 = sbr.rel (%p26) target = $region8
    $region5: #{tpu_custom_call.1} parent=1 // loop_body
      %s30 = ssub.s32 %s25, 1
      %s31 = ssub.s32 %s25, 2
      %s38 = sadd.s32 1, %s33
      %p39 = scmp.ge.s32.totalorder %s38, 2
      %s40 = scalar_select %p39, 0, %s38
      %s41 = sadd.s32 1, %s32
      %s42 = scalar_select %p39, %s41, %s32
      %p43 = scmp.ge.s32.totalorder %s42, 2
      %s44 = scalar_select %p43, 0, %s42
      %s46 = sadd.s32 %s45, 1
      %p49 = scmp.eq.s32.totalorder %s25, 3
      %p50 = scmp.ne.s32.totalorder %s45, %s47
      %p51 = scmp.eq.s32.totalorder %s25, 0
      %p52 = por %p50, %p51
      %p53 = scmp.ne.s32.totalorder %s45, %s47
      %p54 = scmp.eq.s32.totalorder %s30, 3
      %p55 = por %p53, %p54
      %p56 = scmp.ne.s32.totalorder %s47, %s48
      %p57 = scmp.eq.s32.totalorder %s30, 0
      %p58 = por %p56, %p57
      %p59 = scmp.ne.s32.totalorder %s47, %s48
      %p60 = scmp.eq.s32.totalorder %s31, 3
      %p61 = por %p59, %p60
      %p63 = scmp.ne.s32.totalorder %s48, %s62
      %p64 = scmp.eq.s32.totalorder %s31, 0
      %p65 = por %p63, %p64
      %s66 = ssub.s32 %s32, %s44
      %p67 = scmp.eq.s32.totalorder %s66, 0
      %s69 = sadd.s32 %s68, 1
      %s70 = scalar_select %p67, %s68, %s69
      %p73 = pneg %p67
      %p74 = scmp.eq.s32.totalorder %s25, 3
      %p75 = por %p73, %p74
      %p76 = scmp.ne.s32.totalorder %s68, %s71
      %p77 = scmp.eq.s32.totalorder %s25, 0
      %p78 = por %p76, %p77
      %p79 = scmp.ne.s32.totalorder %s68, %s71
      %p80 = scmp.eq.s32.totalorder %s30, 3
      %p81 = por %p79, %p80
      %p82 = scmp.ne.s32.totalorder %s71, %s72
      %p83 = scmp.eq.s32.totalorder %s30, 0
      %p84 = por %p82, %p83
      %p85 = scmp.ne.s32.totalorder %s71, %s72
      %p86 = scmp.eq.s32.totalorder %s31, 3
      %p87 = por %p85, %p86
      %p89 = scmp.ne.s32.totalorder %s72, %s88
      %p90 = scmp.eq.s32.totalorder %s31, 0
      %p91 = por %p89, %p90
      %s92 = ssub.s32 %s32, %s44
      %s93 = ssub.s32 %s33, %s40
      %s94 = sor.u32 %s92, %s93
      %p95 = scmp.eq.s32.totalorder %s94, 0
      %s97 = sadd.s32 %s96, 1
      %s98 = scalar_select %p95, %s96, %s97
      %p101 = pneg %p95
      %p102 = scmp.eq.s32.totalorder %s25, 3
      %p103 = por %p101, %p102
      %p104 = scmp.ne.s32.totalorder %s96, %s99
      %p105 = scmp.eq.s32.totalorder %s25, 0
      %p106 = por %p104, %p105
      %p107 = scmp.ne.s32.totalorder %s96, %s99
      %p108 = scmp.eq.s32.totalorder %s30, 3
      %p109 = por %p107, %p108
      %p110 = scmp.ne.s32.totalorder %s99, %s100
      %p111 = scmp.eq.s32.totalorder %s30, 0
      %p112 = por %p110, %p111
      %p113 = scmp.ne.s32.totalorder %s99, %s100
      %p114 = scmp.eq.s32.totalorder %s31, 3
      %p115 = por %p113, %p114
      %p117 = scmp.ne.s32.totalorder %s100, %s116
      %p118 = scmp.eq.s32.totalorder %s31, 0
      %p119 = por %p117, %p118
      %s121 = sadd.s32 %s120, 1
      %p124 = scmp.eq.s32.totalorder %s25, 3
      %p125 = scmp.ne.s32.totalorder %s120, %s122
      %p126 = scmp.eq.s32.totalorder %s25, 0
      %p127 = por %p125, %p126
      %p128 = scmp.ne.s32.totalorder %s120, %s122
      %p129 = scmp.eq.s32.totalorder %s30, 3
      %p130 = por %p128, %p129
      %p131 = scmp.ne.s32.totalorder %s122, %s123
      %p132 = scmp.eq.s32.totalorder %s30, 0
      %p133 = por %p131, %p132
      %p134 = scmp.ne.s32.totalorder %s122, %s123
      %p135 = scmp.eq.s32.totalorder %s31, 3
      %p136 = por %p134, %p135
      %p138 = scmp.ne.s32.totalorder %s123, %s137
      %p139 = scmp.eq.s32.totalorder %s31, 0
      %p140 = por %p138, %p139
      %s142 = sadd.s32 %s141, 1
      %p145 = scmp.eq.s32.totalorder %s25, 3
      %p146 = scmp.ne.s32.totalorder %s141, %s143
      %p147 = scmp.eq.s32.totalorder %s25, 0
      %p148 = por %p146, %p147
      %p149 = scmp.ne.s32.totalorder %s141, %s143
      %p150 = scmp.eq.s32.totalorder %s30, 3
      %p151 = por %p149, %p150
      %p152 = scmp.ne.s32.totalorder %s143, %s144
      %p153 = scmp.eq.s32.totalorder %s30, 0
      %p154 = por %p152, %p153
      %p155 = scmp.ne.s32.totalorder %s143, %s144
      %p156 = scmp.eq.s32.totalorder %s31, 3
      %p157 = por %p155, %p156
      %p159 = scmp.ne.s32.totalorder %s144, %s158
      %p160 = scmp.eq.s32.totalorder %s31, 0
      %p161 = por %p159, %p160
      %s163 = sadd.s32 %s162, 1
      %p166 = scmp.eq.s32.totalorder %s25, 3
      %p167 = scmp.ne.s32.totalorder %s162, %s164
      %p168 = scmp.eq.s32.totalorder %s25, 0
      %p169 = por %p167, %p168
      %p170 = scmp.ne.s32.totalorder %s162, %s164
      %p171 = scmp.eq.s32.totalorder %s30, 3
      %p172 = por %p170, %p171
      %p173 = scmp.ne.s32.totalorder %s164, %s165
      %p174 = scmp.eq.s32.totalorder %s30, 0
      %p175 = por %p173, %p174
      %p176 = scmp.ne.s32.totalorder %s164, %s165
      %p177 = scmp.eq.s32.totalorder %s31, 3
      %p178 = por %p176, %p177
      %p180 = scmp.ne.s32.totalorder %s165, %s179
      %p181 = scmp.eq.s32.totalorder %s31, 0
      %p182 = por %p180, %p181
      %s184 = sadd.s32 %s183, 1
      %p187 = scmp.eq.s32.totalorder %s25, 3
      %p188 = scmp.ne.s32.totalorder %s183, %s185
      %p189 = scmp.eq.s32.totalorder %s25, 0
      %p190 = por %p188, %p189
      %p191 = scmp.ne.s32.totalorder %s183, %s185
      %p192 = scmp.eq.s32.totalorder %s30, 3
      %p193 = por %p191, %p192
      %p194 = scmp.ne.s32.totalorder %s185, %s186
      %p195 = scmp.eq.s32.totalorder %s30, 0
      %p196 = por %p194, %p195
      %p197 = scmp.ne.s32.totalorder %s185, %s186
      %p198 = scmp.eq.s32.totalorder %s31, 3
      %p199 = por %p197, %p198
      %p201 = scmp.ne.s32.totalorder %s186, %s200
      %p202 = scmp.eq.s32.totalorder %s31, 0
      %p203 = por %p201, %p202
      %s205 = sadd.s32 %s204, 1
      %p208 = scmp.eq.s32.totalorder %s25, 3
      %p209 = scmp.ne.s32.totalorder %s204, %s206
      %p210 = scmp.eq.s32.totalorder %s25, 0
      %p211 = por %p209, %p210
      %p212 = scmp.ne.s32.totalorder %s204, %s206
      %p213 = scmp.eq.s32.totalorder %s30, 3
      %p214 = por %p212, %p213
      %p215 = scmp.ne.s32.totalorder %s206, %s207
      %p216 = scmp.eq.s32.totalorder %s30, 0
      %p217 = por %p215, %p216
      %p218 = scmp.ne.s32.totalorder %s206, %s207
      %p219 = scmp.eq.s32.totalorder %s31, 3
      %p220 = por %p218, %p219
      %p222 = scmp.ne.s32.totalorder %s207, %s221
      %p223 = scmp.eq.s32.totalorder %s31, 0
      %p224 = por %p222, %p223
      %s226 = sadd.s32 %s225, 1
      %p229 = scmp.eq.s32.totalorder %s25, 3
      %p230 = scmp.ne.s32.totalorder %s225, %s227
      %p231 = scmp.eq.s32.totalorder %s25, 0
      %p232 = por %p230, %p231
      %p233 = scmp.ne.s32.totalorder %s225, %s227
      %p234 = scmp.eq.s32.totalorder %s30, 3
      %p235 = por %p233, %p234
      %p236 = scmp.ne.s32.totalorder %s227, %s228
      %p237 = scmp.eq.s32.totalorder %s30, 0
      %p238 = por %p236, %p237
      %p239 = scmp.ne.s32.totalorder %s227, %s228
      %p240 = scmp.eq.s32.totalorder %s31, 3
      %p241 = por %p239, %p240
      %p243 = scmp.ne.s32.totalorder %s228, %s242
      %p244 = scmp.eq.s32.totalorder %s31, 0
      %p245 = por %p243, %p244
      %s246 = ssub.s32 %s32, %s44
      %s247 = ssub.s32 %s33, %s40
      %s248 = sor.u32 %s246, %s247
      %p249 = scmp.eq.s32.totalorder %s248, 0
      %s251 = sadd.s32 %s250, 1
      %s252 = scalar_select %p249, %s250, %s251
      %p255 = pneg %p249
      %p256 = scmp.eq.s32.totalorder %s25, 3
      %p257 = por %p255, %p256
      %p258 = scmp.ne.s32.totalorder %s250, %s253
      %p259 = scmp.eq.s32.totalorder %s25, 0
      %p260 = por %p258, %p259
      %p261 = scmp.ne.s32.totalorder %s250, %s253
      %p262 = scmp.eq.s32.totalorder %s30, 3
      %p263 = por %p261, %p262
      %p264 = scmp.ne.s32.totalorder %s253, %s254
      %p265 = scmp.eq.s32.totalorder %s30, 0
      %p266 = por %p264, %p265
      %p267 = scmp.ne.s32.totalorder %s253, %s254
      %p268 = scmp.eq.s32.totalorder %s31, 3
      %p269 = por %p267, %p268
      %p271 = scmp.ne.s32.totalorder %s254, %s270
      %p272 = scmp.eq.s32.totalorder %s31, 0
      %p273 = por %p271, %p272
      %p274 = scmp.le.s32.totalorder 1, %s25
      %p275 = scmp.lt.s32.totalorder %s25, 5
      %p276 = pnand %p274, %p275
      %p277 = pneg %p276
      // Predicated region
      $region9: #{tpu_custom_call.1} parent=5 // pred_check
        _
      $region10: #{tpu_custom_call.1} parent=5 // pred_check_branch
        %279 = sbr.rel (%p276) target = $region12
      $region11: #{tpu_custom_call.1} parent=5 // pred_region
        %s280 = ssub.s32 %s25, 1
        // Predicated region
        $region13: #{tpu_custom_call.1} parent=11 // pred_check
          %p281 = pneg %p58
        $region14: #{tpu_custom_call.1} parent=11 // pred_check_branch
          %283 = sbr.rel (%p281) target = $region16
        $region15: #{tpu_custom_call.1} parent=11 // pred_region
          _
        $region16: #{tpu_custom_call.1} parent=11 // pred_fallthru
          _
        // Predicated region
        $region17: #{tpu_custom_call.1} parent=11 // pred_check
          %p284 = pneg %p133
        $region18: #{tpu_custom_call.1} parent=11 // pred_check_branch
          %286 = sbr.rel (%p284) target = $region20
        $region19: #{tpu_custom_call.1} parent=11 // pred_region
          _
        $region20: #{tpu_custom_call.1} parent=11 // pred_fallthru
          _
        // Predicated region
        $region21: #{tpu_custom_call.1} parent=11 // pred_check
          %p287 = pneg %p154
        $region22: #{tpu_custom_call.1} parent=11 // pred_check_branch
          %289 = sbr.rel (%p287) target = $region24
        $region23: #{tpu_custom_call.1} parent=11 // pred_region
          _
        $region24: #{tpu_custom_call.1} parent=11 // pred_fallthru
          _
        // Predicated region
        $region25: #{tpu_custom_call.1} parent=11 // pred_check
          %p290 = pneg %p175
        $region26: #{tpu_custom_call.1} parent=11 // pred_check_branch
          %292 = sbr.rel (%p290) target = $region28
        $region27: #{tpu_custom_call.1} parent=11 // pred_region
          _
        $region28: #{tpu_custom_call.1} parent=11 // pred_fallthru
          _
        // Predicated region
        $region29: #{tpu_custom_call.1} parent=11 // pred_check
          %p293 = pneg %p196
        $region30: #{tpu_custom_call.1} parent=11 // pred_check_branch
          %295 = sbr.rel (%p293) target = $region32
        $region31: #{tpu_custom_call.1} parent=11 // pred_region
          _
        $region32: #{tpu_custom_call.1} parent=11 // pred_fallthru
          _
        // Predicated region
        $region33: #{tpu_custom_call.1} parent=11 // pred_check
          %p296 = pneg %p217
        $region34: #{tpu_custom_call.1} parent=11 // pred_check_branch
          %298 = sbr.rel (%p296) target = $region36
        $region35: #{tpu_custom_call.1} parent=11 // pred_region
          _
        $region36: #{tpu_custom_call.1} parent=11 // pred_fallthru
          _
        // Predicated region
        $region37: #{tpu_custom_call.1} parent=11 // pred_check
          %p299 = pneg %p238
        $region38: #{tpu_custom_call.1} parent=11 // pred_check_branch
          %301 = sbr.rel (%p299) target = $region40
        $region39: #{tpu_custom_call.1} parent=11 // pred_region
          _
        $region40: #{tpu_custom_call.1} parent=11 // pred_fallthru
          _
      $region12: #{tpu_custom_call.1} parent=5 // pred_fallthru
        _
      %p302 = scmp.lt.s32.totalorder %s25, 4
      // Predicated region
      $region41: #{tpu_custom_call.1} parent=5 // pred_check
        %p303 = pneg %p302
      $region42: #{tpu_custom_call.1} parent=5 // pred_check_branch
        %305 = sbr.rel (%p303) target = $region44
      $region43: #{tpu_custom_call.1} parent=5 // pred_region
        // Predicated region
        $region45: #{tpu_custom_call.1} parent=43 // pred_check
          %p306 = pneg %p78
        $region46: #{tpu_custom_call.1} parent=43 // pred_check_branch
          %308 = sbr.rel (%p306) target = $region48
        $region47: #{tpu_custom_call.1} parent=43 // pred_region
          %s309 = sand.u32 %s68, 1
          %s310 = scalar_lea.sflag [#allocation6], %s309
          %s311 = sand.u32 %s68, 1
          %s312 = smul.addr %s311, 64
          %s313 = scalar_lea.vmem [#allocation5], %s312
          %s315 = ssub.s32 1024, 1024
          %316 = vsyncadd %s310, %s315
          %s317 = smul.addr %s32, 8
          %s318 = smul.addr %s317, 128
          %s319 = scalar_lea.hbm %s1, %s318
          %s320 = sshll.u32 %s313, 4
          %s321 = int_to_ptr.vmem [resolvable:$true] %s320
          %326 = dma.hbm_to_vmem [thread:$0]  %s319, 1024, %s321, %s310, 256, 256, 16
        $region48: #{tpu_custom_call.1} parent=43 // pred_fallthru
          _
        // Predicated region
        $region49: #{tpu_custom_call.1} parent=43 // pred_check
          %p327 = pneg %p106
        $region50: #{tpu_custom_call.1} parent=43 // pred_check_branch
          %329 = sbr.rel (%p327) target = $region52
        $region51: #{tpu_custom_call.1} parent=43 // pred_region
          %s330 = sand.u32 %s96, 1
          %s331 = scalar_lea.sflag [#allocation9], %s330
          %s332 = sand.u32 %s96, 1
          %s333 = smul.addr %s332, 32
          %s334 = scalar_lea.vmem [#allocation8], %s333
          %s336 = ssub.s32 512, 512
          %337 = vsyncadd %s331, %s336
          %s338 = smul.addr %s32, 8
          %s339 = sadd.s32 %s33, %s338
          %s340 = smul.addr %s339, 128
          %s341 = scalar_lea.hbm %s2, %s340
          %s342 = sshll.u32 %s334, 4
          %s343 = int_to_ptr.vmem [resolvable:$true] %s342
          %348 = dma.hbm_to_vmem [thread:$0]  %s341, 512, %s343, %s331, 256, 128, 8
        $region52: #{tpu_custom_call.1} parent=43 // pred_fallthru
          _
      $region44: #{tpu_custom_call.1} parent=5 // pred_fallthru
        _
      %p349 = scmp.le.s32.totalorder 1, %s25
      %p350 = scmp.lt.s32.totalorder %s25, 5
      %p351 = pnand %p349, %p350
      %p352 = pneg %p351
      // Predicated region
      $region53: #{tpu_custom_call.1} parent=5 // pred_check
        _
      $region54: #{tpu_custom_call.1} parent=5 // pred_check_branch
        %354 = sbr.rel (%p351) target = $region56
      $region55: #{tpu_custom_call.1} parent=5 // pred_region
        %s355 = ssub.s32 %s25, 1
        %s356 = sand.u32 %s71, 1
        %s357 = scalar_lea.sflag [#allocation6], %s356
        %s358 = sand.u32 %s71, 1
        %s359 = smul.addr %s358, 64
        %s360 = scalar_lea.vmem [#allocation5], %s359
        // Predicated region
        $region57: #{tpu_custom_call.1} parent=55 // pred_check
          %p361 = pneg %p84
        $region58: #{tpu_custom_call.1} parent=55 // pred_check_branch
          %363 = sbr.rel (%p361) target = $region60
        $region59: #{tpu_custom_call.1} parent=55 // pred_region
          %364 = dma.done %s357, 1024
        $region60: #{tpu_custom_call.1} parent=55 // pred_fallthru
          _
        %s365 = sand.u32 %s99, 1
        %s366 = scalar_lea.sflag [#allocation9], %s365
        %s367 = sand.u32 %s99, 1
        %s368 = smul.addr %s367, 32
        %s369 = scalar_lea.vmem [#allocation8], %s368
        // Predicated region
        $region61: #{tpu_custom_call.1} parent=55 // pred_check
          %p370 = pneg %p112
        $region62: #{tpu_custom_call.1} parent=55 // pred_check_branch
          %372 = sbr.rel (%p370) target = $region64
        $region63: #{tpu_custom_call.1} parent=55 // pred_region
          %373 = dma.done %s366, 512
        $region64: #{tpu_custom_call.1} parent=55 // pred_fallthru
          _
        %p374 = pneg %p58
        %p375 = pneg %p55
        %s376 = sand.u32 %s71, 1
        %s377 = scalar_lea.sflag [#allocation6], %s376
        %s378 = sand.u32 %s71, 1
        %s379 = smul.addr %s378, 64
        %s380 = scalar_lea.vmem [#allocation5], %s379
        %p381 = pneg %p84
        %p382 = pneg %p81
        %s383 = sand.u32 %s99, 1
        %s384 = scalar_lea.sflag [#allocation9], %s383
        %s385 = sand.u32 %s99, 1
        %s386 = smul.addr %s385, 32
        %s387 = scalar_lea.vmem [#allocation8], %s386
        %p388 = pneg %p112
        %p389 = pneg %p109
        %p390 = pneg %p133
        %p391 = pneg %p130
        %p392 = pneg %p154
        %p393 = pneg %p151
        %p394 = pneg %p175
        %p395 = pneg %p172
        %p396 = pneg %p196
        %p397 = pneg %p193
        %p398 = pneg %p217
        %p399 = pneg %p214
        %p400 = pneg %p238
        %p401 = pneg %p235
        %p402 = pneg %p266
        %p403 = pneg %p263
        %s404 = sand.u32 %s253, 1
        %s405 = scalar_lea.sflag [#allocation7], %s404
        %s406 = sand.u32 %s253, 1
        %s407 = smul.addr %s406, 32
        %s408 = scalar_lea.vmem [#allocation10], %s407
        %p410 = scmp.eq.s32.totalorder %s35, 0
        // Predicated region
        $region65: #{tpu_custom_call.1} parent=55 // pred_check
          %p411 = pneg %p410
        $region66: #{tpu_custom_call.1} parent=55 // pred_check_branch
          %413 = sbr.rel (%p411) target = $region68
        $region67: #{tpu_custom_call.1} parent=55 // pred_region
          %v414 = vld [vmem:[%s360] sm:$0xff]
          %v415 = vld [vmem:[%s360 + $0x8] sm:$0xff]
          %v416 = vld [vmem:[%s360 + $0x10] sm:$0xff]
          %v417 = vld [vmem:[%s360 + $0x18] sm:$0xff]
          %v418 = vld [vmem:[%s360 + $0x20] sm:$0xff]
          %v419 = vld [vmem:[%s360 + $0x28] sm:$0xff]
          %v420 = vld [vmem:[%s360 + $0x30] sm:$0xff]
          %v421 = vld [vmem:[%s360 + $0x38] sm:$0xff]
          %v422 = vpack.c.bf16 %v416, %v414
          %v423 = vpack.c.bf16 %v417, %v415
          %v424 = vpack.c.bf16 %v420, %v418
          %v425 = vpack.c.bf16 %v421, %v419
          %v426 = vld [vmem:[%s5] sm:$0xf]
          %v427 = vpack.c.bf16 %v426, %v426
          %v428 = vld [vmem:[%s7] sm:$0xff]
          %v429 = vld [vmem:[%s7 + $0x8] sm:$0xff]
          %v430 = vld [vmem:[%s7 + $0x10] sm:$0xff]
          %v431 = vld [vmem:[%s7 + $0x18] sm:$0xff]
          %v432 = vpack.c.bf16 %v429, %v428
          %v433 = vpack.c.bf16 %v431, %v430
          %v434 = vld [vmem:[%s6] sm:$0xf]
          %436 = vset.pattern.permute.xlu0 0
          %437 = vperm.xlu0 %436, %v434
          %v438 = vpop.permute.xlu0 %437
          %vm440 = vcmask 261120
          %v442 = vsel %vm440, %v427, 0
          %444 = vmatprep.subr.bf16.mxu0 0
          %445 = vmatpush1.bf16.msra.mxu0 0
          %446 = vmatprep.subr.bf16.mxu0 0
          %447 = vmatpush1.bf16.msra.mxu0 0
          %448 = vmatprep.subr.bf16.mxu0 0
          %449 = vmatpush1.bf16.msra.mxu0 0
          %450 = vmatprep.subr.bf16.mxu0 0
          %451 = vmatpush1.bf16.msra.mxu0 0
          %452 = vmatprep.subr.bf16.mxu0 0
          %453 = vmatpush1.bf16.msra.mxu0 0
          %454 = vmatprep.subr.bf16.mxu0 0
          %455 = vmatpush1.bf16.msra.mxu0 0
          %456 = vmatprep.subr.bf16.mxu0 %v425
          %457 = vmatpush1.bf16.msra.mxu0 %v424
          %458 = vmatprep.subr.bf16.mxu0 %v423
          %459 = vmatpush1.bf16.msra.mxu0 %v422
          %460 = vmatprep.subr.bf16.mxu0 0
          %461 = vmatpush2.bf16.msra.mxu0 0
          %462 = vmatprep.subr.bf16.mxu0 0
          %463 = vmatpush2.bf16.msra.mxu0 0
          %464 = vmatprep.subr.bf16.mxu0 0
          %465 = vmatpush2.bf16.msra.mxu0 0
          %466 = vmatprep.subr.bf16.mxu0 0
          %467 = vmatpush2.bf16.msra.mxu0 0
          %468 = vmatprep.subr.bf16.mxu0 0
          %469 = vmatpush2.bf16.msra.mxu0 0
          %470 = vmatprep.subr.bf16.mxu0 0
          %471 = vmatpush2.bf16.msra.mxu0 0
          %472 = vmatprep.subr.bf16.mxu0 0
          %473 = vmatpush2.bf16.msra.mxu0 0
          %474 = vmatprep.subr.bf16.mxu0 0
          %475 = vmatpush2.bf16.msra.mxu0 0
          %476 = vmatprep.mubr.bf16.mxu0 0
          %477 = vmatmul.mubr.bf16.gmra.mxu0 %v442
          %v478 = vpop.f32.mrf.mxu0
          %v479 = vadd.f32 %v438, %v478
          %v480 = vpop.f32.mrf.mxu0
          %v481 = vadd.f32 %v438, %v480
          %v482 = vpop.f32.mrf.mxu0
          %v483 = vpop.f32.mrf.mxu0
          %484 = vdwg.mxu0
          %v485 = vld [vmem:[%s8] sm:$0xff]
          %v486 = vld [vmem:[%s8 + $0x8] sm:$0xff]
          %v487 = vld [vmem:[%s8 + $0x10] sm:$0xff]
          %v488 = vld [vmem:[%s8 + $0x18] sm:$0xff]
          %490 = vset.pattern.permute.xlu0 0
          %491 = vperm.xlu0 %490, %v485
          %v492 = vpop.permute.xlu0 %491
          %495 = vset.pattern.permute.xlu0 0
          %496 = vperm.xlu0 %495, %v486
          %v497 = vpop.permute.xlu0 %496
          %500 = vset.pattern.permute.xlu0 0
          %501 = vperm.xlu0 %500, %v487
          %v502 = vpop.permute.xlu0 %501
          %505 = vset.pattern.permute.xlu0 0
          %506 = vperm.xlu0 %505, %v488
          %v507 = vpop.permute.xlu0 %506
          %v510 = vsel %vm440, %v432, 0
          %v513 = vsel %vm440, %v433, 0
          %515 = vmatprep.subr.bf16.mxu0 0
          %516 = vmatpush1.bf16.msra.mxu0 0
          %517 = vmatprep.subr.bf16.mxu0 0
          %518 = vmatpush1.bf16.msra.mxu0 0
          %519 = vmatprep.subr.bf16.mxu0 0
          %520 = vmatpush1.bf16.msra.mxu0 0
          %521 = vmatprep.subr.bf16.mxu0 0
          %522 = vmatpush1.bf16.msra.mxu0 0
          %523 = vmatprep.subr.bf16.mxu0 0
          %524 = vmatpush1.bf16.msra.mxu0 0
          %525 = vmatprep.subr.bf16.mxu0 0
          %526 = vmatpush1.bf16.msra.mxu0 0
          %527 = vmatprep.subr.bf16.mxu0 %v425
          %528 = vmatpush1.bf16.msra.mxu0 %v424
          %529 = vmatprep.subr.bf16.mxu0 %v423
          %530 = vmatpush1.bf16.msra.mxu0 %v422
          %531 = vmatprep.subr.bf16.mxu0 0
          %532 = vmatpush2.bf16.msra.mxu0 0
          %533 = vmatprep.subr.bf16.mxu0 0
          %534 = vmatpush2.bf16.msra.mxu0 0
          %535 = vmatprep.subr.bf16.mxu0 0
          %536 = vmatpush2.bf16.msra.mxu0 0
          %537 = vmatprep.subr.bf16.mxu0 0
          %538 = vmatpush2.bf16.msra.mxu0 0
          %539 = vmatprep.subr.bf16.mxu0 0
          %540 = vmatpush2.bf16.msra.mxu0 0
          %541 = vmatprep.subr.bf16.mxu0 0
          %542 = vmatpush2.bf16.msra.mxu0 0
          %543 = vmatprep.subr.bf16.mxu0 0
          %544 = vmatpush2.bf16.msra.mxu0 0
          %545 = vmatprep.subr.bf16.mxu0 0
          %546 = vmatpush2.bf16.msra.mxu0 0
          %547 = vmatprep.mubr.bf16.mxu0 0
          %548 = vmatmul.mubr.bf16.gmra.mxu0 %v510
          %v549 = vpop.f32.mrf.mxu0
          %v550 = vadd.f32 %v492, %v549
          %v551 = vpop.f32.mrf.mxu0
          %v552 = vadd.f32 %v492, %v551
          %v553 = vpop.f32.mrf.mxu0
          %v554 = vadd.f32 %v497, %v553
          %v555 = vpop.f32.mrf.mxu0
          %v556 = vadd.f32 %v497, %v555
          %557 = vmatprep.mubr.bf16.mxu0 0
          %558 = vmatmul.mubr.bf16.gmra.mxu0 %v513
          %v559 = vpop.f32.mrf.mxu0
          %v560 = vadd.f32 %v502, %v559
          %v561 = vpop.f32.mrf.mxu0
          %v562 = vadd.f32 %v502, %v561
          %v563 = vpop.f32.mrf.mxu0
          %v564 = vadd.f32 %v507, %v563
          %v565 = vpop.f32.mrf.mxu0
          %v566 = vadd.f32 %v507, %v565
          %567 = vdwg.mxu0
          %v568 = vpack.c.bf16 %v479, %v479
          %v569 = vpack.c.bf16 %v481, %v481
          %v572 = vcombine.low %v568, %v569
          %v574 = vunpack.c.l.s4 1983009808
          %v575 = vunpack.c.0.s8 %v574
          %v576 = vlaneseq
          %v577 = vshrl.u32 %v576, 7
          %v578 = vsub.s32 %v575, %v577
          %v579 = vrot.slane %v572, %v578
          %581 = vst [vmem:[#allocation2] sm:$0xf] %v579
          %v582 = vpack.c.bf16 %v554, %v550
          %v583 = vpack.c.bf16 %v556, %v552
          %v584 = vpack.c.bf16 %v564, %v560
          %v585 = vpack.c.bf16 %v566, %v562
          %v590 = vunpack.c.l.b16 %v582
          %v591 = vunpack.c.l.b16 %v583
          %v592 = vunpack.c.h.b16 %v582
          %v593 = vunpack.c.h.b16 %v583
          %v594 = vunpack.c.l.b16 %v584
          %v595 = vunpack.c.l.b16 %v585
          %v596 = vunpack.c.h.b16 %v584
          %v597 = vunpack.c.h.b16 %v585
          %v598 = vpack.c.b16 %v591, %v590
          %v599 = vpack.c.b16 %v593, %v592
          %v600 = vpack.c.b16 %v595, %v594
          %v601 = vpack.c.b16 %v597, %v596
          %606 = vst [vmem:[#allocation3] sm:$0xff] %v598
          %607 = vst [vmem:[#allocation3 + $0x8] sm:$0xff] %v599
          %608 = vst [vmem:[#allocation3 + $0x10] sm:$0xff] %v600
          %609 = vst [vmem:[#allocation3 + $0x18] sm:$0xff] %v601
        $region68: #{tpu_custom_call.1} parent=55 // pred_fallthru
          _
        %v610 = vld [vmem:[%s369] sm:$0xff]
        %v611 = vld [vmem:[%s369 + $0x8] sm:$0xff]
        %v612 = vld [vmem:[%s369 + $0x10] sm:$0xff]
        %v613 = vld [vmem:[%s369 + $0x18] sm:$0xff]
        %v614 = vld [vmem:[%s3] sm:$0xf]
        %v615 = vpack.c.bf16 %v614, %v614
        %v616 = vpack.c.bf16 %v611, %v610
        %v617 = vpack.c.bf16 %v613, %v612
        %v618 = vld [vmem:[%s4] sm:$0xf]
        %620 = vset.pattern.permute.xlu0 0
        %621 = vperm.xlu0 %620, %v618
        %v622 = vpop.permute.xlu0 %621
        %vm624 = vcmask 261120
        %v626 = vsel %vm624, %v615, 0
        %628 = vmatprep.subr.bf16.mxu0 0
        %629 = vmatpush1.bf16.msra.mxu0 0
        %630 = vmatprep.subr.bf16.mxu0 0
        %631 = vmatpush1.bf16.msra.mxu0 0
        %632 = vmatprep.subr.bf16.mxu0 0
        %633 = vmatpush1.bf16.msra.mxu0 0
        %634 = vmatprep.subr.bf16.mxu0 0
        %635 = vmatpush1.bf16.msra.mxu0 0
        %636 = vmatprep.subr.bf16.mxu0 0
        %637 = vmatpush1.bf16.msra.mxu0 0
        %638 = vmatprep.subr.bf16.mxu0 0
        %639 = vmatpush1.bf16.msra.mxu0 0
        %640 = vmatprep.subr.bf16.mxu0 0
        %641 = vmatpush1.bf16.msra.mxu0 %v617
        %642 = vmatprep.subr.bf16.mxu0 0
        %643 = vmatpush1.bf16.msra.mxu0 %v616
        %644 = vmatprep.subr.bf16.mxu0 0
        %645 = vmatpush2.bf16.msra.mxu0 0
        %646 = vmatprep.subr.bf16.mxu0 0
        %647 = vmatpush2.bf16.msra.mxu0 0
        %648 = vmatprep.subr.bf16.mxu0 0
        %649 = vmatpush2.bf16.msra.mxu0 0
        %650 = vmatprep.subr.bf16.mxu0 0
        %651 = vmatpush2.bf16.msra.mxu0 0
        %652 = vmatprep.subr.bf16.mxu0 0
        %653 = vmatpush2.bf16.msra.mxu0 0
        %654 = vmatprep.subr.bf16.mxu0 0
        %655 = vmatpush2.bf16.msra.mxu0 0
        %656 = vmatprep.subr.bf16.mxu0 0
        %657 = vmatpush2.bf16.msra.mxu0 0
        %658 = vmatprep.subr.bf16.mxu0 0
        %659 = vmatpush2.bf16.msra.mxu0 0
        %660 = vmatprep.mubr.bf16.mxu0 0
        %661 = vmatmul.mubr.bf16.gmra.mxu0 %v626
        %v662 = vpop.f32.mrf.mxu0
        %v663 = vadd.f32 %v622, %v662
        %v664 = vpop.f32.mrf.mxu0
        %v665 = vpop.f32.mrf.mxu0
        %v666 = vpop.f32.mrf.mxu0
        %667 = vdwg.mxu0
        %v668 = vpack.c.bf16 %v663, %v663
        %v669 = vld [vmem:[#allocation2] sm:$0xf]
        %670 = vxpose.xlu0.c.b16.start [1/8] %v668, 128
        %671 = vxpose.xlu0.c.b16.cont [2/8] 0, 128
        %672 = vxpose.xlu0.c.b16.cont [3/8] 0, 128
        %673 = vxpose.xlu0.c.b16.cont [4/8] 0, 128
        %674 = vxpose.xlu0.c.b16.cont [5/8] 0, 128
        %675 = vxpose.xlu0.c.b16.cont [6/8] 0, 128
        %676 = vxpose.xlu0.c.b16.cont [7/8] 0, 128
        %677 = vxpose.xlu0.c.b16.end [8/8] 0, 128
        %v678 = vpop.trf.xlu0
        %v679 = vpop.trf.xlu0
        %v680 = vpop.trf.xlu0
        %v681 = vpop.trf.xlu0
        %v682 = vpop.trf.xlu0
        %v683 = vpop.trf.xlu0
        %v684 = vpop.trf.xlu0
        %v685 = vpop.trf.xlu0
        %v688 = vunpack.c.l.s4 1983009808
        %v689 = vunpack.c.0.s8 %v688
        %v690 = vlaneseq
        %v691 = vshrl.u32 %v690, 7
        %v692 = vsub.s32 %v689, %v691
        %v693 = vrot.slane %v669, %v692
        %v694 = vcombine.high %v693, %v693
        %vm695 = vcmask 31744
        %v697 = vsel %vm695, %v678, 0
        %v700 = vsel %vm695, %v679, 0
        %v703 = vsel %vm695, %v680, 0
        %v706 = vsel %vm695, %v681, 0
        %v709 = vsel %vm695, %v682, 0
        %v712 = vsel %vm695, %v683, 0
        %v715 = vsel %vm695, %v684, 0
        %v718 = vsel %vm695, %v685, 0
        %vm720 = vcmask 1041408
        %v722 = vsel %vm720, %v693, 0
        %v725 = vsel %vm720, %v694, 0
        %727 = vmatprep.subr.bf16.mxu0 0
        %728 = vmatpush1.bf16.msra.mxu0 0
        %729 = vmatprep.subr.bf16.mxu0 0
        %730 = vmatpush1.bf16.msra.mxu0 0
        %731 = vmatprep.subr.bf16.mxu0 0
        %732 = vmatpush1.bf16.msra.mxu0 0
        %733 = vmatprep.subr.bf16.mxu0 0
        %734 = vmatpush1.bf16.msra.mxu0 0
        %735 = vmatprep.subr.bf16.mxu0 0
        %736 = vmatpush1.bf16.msra.mxu0 0
        %737 = vmatprep.subr.bf16.mxu0 0
        %738 = vmatpush1.bf16.msra.mxu0 0
        %739 = vmatprep.subr.bf16.mxu0 0
        %740 = vmatpush1.bf16.msra.mxu0 0
        %741 = vmatprep.subr.bf16.mxu0 %v725
        %742 = vmatpush1.bf16.msra.mxu0 %v722
        %743 = vmatprep.subr.bf16.mxu0 0
        %744 = vmatpush2.bf16.msra.mxu0 0
        %745 = vmatprep.subr.bf16.mxu0 0
        %746 = vmatpush2.bf16.msra.mxu0 0
        %747 = vmatprep.subr.bf16.mxu0 0
        %748 = vmatpush2.bf16.msra.mxu0 0
        %749 = vmatprep.subr.bf16.mxu0 0
        %750 = vmatpush2.bf16.msra.mxu0 0
        %751 = vmatprep.subr.bf16.mxu0 0
        %752 = vmatpush2.bf16.msra.mxu0 0
        %753 = vmatprep.subr.bf16.mxu0 0
        %754 = vmatpush2.bf16.msra.mxu0 0
        %755 = vmatprep.subr.bf16.mxu0 0
        %756 = vmatpush2.bf16.msra.mxu0 0
        %757 = vmatprep.subr.bf16.mxu0 0
        %758 = vmatpush2.bf16.msra.mxu0 0
        %759 = vmatprep.mubr.bf16.mxu0 0
        %760 = vmatmul.mubr.bf16.gmra.mxu0 %v697
        %v761 = vpop.f32.mrf.mxu0
        %v762 = vadd.f32 0.0, %v761
        %v763 = vpop.f32.mrf.mxu0
        %v764 = vadd.f32 0.0, %v763
        %v765 = vpop.f32.mrf.mxu0
        %v766 = vadd.f32 0.0, %v765
        %v767 = vpop.f32.mrf.mxu0
        %v768 = vadd.f32 0.0, %v767
        %769 = vmatprep.mubr.bf16.mxu0 0
        %770 = vmatmul.mubr.bf16.gmra.mxu0 %v700
        %v771 = vpop.f32.mrf.mxu0
        %v772 = vadd.f32 0.0, %v771
        %v773 = vpop.f32.mrf.mxu0
        %v774 = vadd.f32 0.0, %v773
        %v775 = vpop.f32.mrf.mxu0
        %v776 = vadd.f32 0.0, %v775
        %v777 = vpop.f32.mrf.mxu0
        %v778 = vadd.f32 0.0, %v777
        %779 = vmatprep.mubr.bf16.mxu0 0
        %780 = vmatmul.mubr.bf16.gmra.mxu0 %v703
        %v781 = vpop.f32.mrf.mxu0
        %v782 = vadd.f32 0.0, %v781
        %v783 = vpop.f32.mrf.mxu0
        %v784 = vadd.f32 0.0, %v783
        %v785 = vpop.f32.mrf.mxu0
        %v786 = vadd.f32 0.0, %v785
        %v787 = vpop.f32.mrf.mxu0
        %v788 = vadd.f32 0.0, %v787
        %789 = vmatprep.mubr.bf16.mxu0 0
        %790 = vmatmul.mubr.bf16.gmra.mxu0 %v706
        %v791 = vpop.f32.mrf.mxu0
        %v792 = vadd.f32 0.0, %v791
        %v793 = vpop.f32.mrf.mxu0
        %v794 = vadd.f32 0.0, %v793
        %v795 = vpop.f32.mrf.mxu0
        %v796 = vadd.f32 0.0, %v795
        %v797 = vpop.f32.mrf.mxu0
        %v798 = vadd.f32 0.0, %v797
        %799 = vmatprep.mubr.bf16.mxu0 0
        %800 = vmatmul.mubr.bf16.gmra.mxu0 %v709
        %v801 = vpop.f32.mrf.mxu0
        %v802 = vadd.f32 0.0, %v801
        %v803 = vpop.f32.mrf.mxu0
        %v804 = vadd.f32 0.0, %v803
        %v805 = vpop.f32.mrf.mxu0
        %v806 = vadd.f32 0.0, %v805
        %v807 = vpop.f32.mrf.mxu0
        %v808 = vadd.f32 0.0, %v807
        %809 = vmatprep.mubr.bf16.mxu0 0
        %810 = vmatmul.mubr.bf16.gmra.mxu0 %v712
        %v811 = vpop.f32.mrf.mxu0
        %v812 = vadd.f32 0.0, %v811
        %v813 = vpop.f32.mrf.mxu0
        %v814 = vadd.f32 0.0, %v813
        %v815 = vpop.f32.mrf.mxu0
        %v816 = vadd.f32 0.0, %v815
        %v817 = vpop.f32.mrf.mxu0
        %v818 = vadd.f32 0.0, %v817
        %819 = vmatprep.mubr.bf16.mxu0 0
        %820 = vmatmul.mubr.bf16.gmra.mxu0 %v715
        %v821 = vpop.f32.mrf.mxu0
        %v822 = vadd.f32 0.0, %v821
        %v823 = vpop.f32.mrf.mxu0
        %v824 = vadd.f32 0.0, %v823
        %v825 = vpop.f32.mrf.mxu0
        %v826 = vadd.f32 0.0, %v825
        %v827 = vpop.f32.mrf.mxu0
        %v828 = vadd.f32 0.0, %v827
        %829 = vmatprep.mubr.bf16.mxu0 0
        %830 = vmatmul.mubr.bf16.gmra.mxu0 %v718
        %v831 = vpop.f32.mrf.mxu0
        %v832 = vadd.f32 0.0, %v831
        %v833 = vpop.f32.mrf.mxu0
        %v834 = vadd.f32 0.0, %v833
        %v835 = vpop.f32.mrf.mxu0
        %v836 = vadd.f32 0.0, %v835
        %v837 = vpop.f32.mrf.mxu0
        %v838 = vadd.f32 0.0, %v837
        %839 = vdwg.mxu0
        %v840 = vmax.f32 %v762, %v764
        %841 = vmax.xlane.f32.xlu0 %v840
        %v842 = vpop.xlane.xlu0 %841
        %v843 = vmax.f32 %v766, %v768
        %844 = vmax.xlane.f32.xlu0 %v843
        %v845 = vpop.xlane.xlu0 %844
        %v846 = vmax.f32 %v772, %v774
        %847 = vmax.xlane.f32.xlu0 %v846
        %v848 = vpop.xlane.xlu0 %847
        %v849 = vmax.f32 %v776, %v778
        %850 = vmax.xlane.f32.xlu0 %v849
        %v851 = vpop.xlane.xlu0 %850
        %v852 = vmax.f32 %v782, %v784
        %853 = vmax.xlane.f32.xlu0 %v852
        %v854 = vpop.xlane.xlu0 %853
        %v855 = vmax.f32 %v786, %v788
        %856 = vmax.xlane.f32.xlu0 %v855
        %v857 = vpop.xlane.xlu0 %856
        %v858 = vmax.f32 %v792, %v794
        %859 = vmax.xlane.f32.xlu0 %v858
        %v860 = vpop.xlane.xlu0 %859
        %v861 = vmax.f32 %v796, %v798
        %862 = vmax.xlane.f32.xlu0 %v861
        %v863 = vpop.xlane.xlu0 %862
        %v864 = vmax.f32 %v802, %v804
        %865 = vmax.xlane.f32.xlu0 %v864
        %v866 = vpop.xlane.xlu0 %865
        %v867 = vmax.f32 %v806, %v808
        %868 = vmax.xlane.f32.xlu0 %v867
        %v869 = vpop.xlane.xlu0 %868
        %v870 = vmax.f32 %v812, %v814
        %871 = vmax.xlane.f32.xlu0 %v870
        %v872 = vpop.xlane.xlu0 %871
        %v873 = vmax.f32 %v816, %v818
        %874 = vmax.xlane.f32.xlu0 %v873
        %v875 = vpop.xlane.xlu0 %874
        %v876 = vmax.f32 %v822, %v824
        %877 = vmax.xlane.f32.xlu0 %v876
        %v878 = vpop.xlane.xlu0 %877
        %v879 = vmax.f32 %v826, %v828
        %880 = vmax.xlane.f32.xlu0 %v879
        %v881 = vpop.xlane.xlu0 %880
        %v882 = vmax.f32 %v832, %v834
        %883 = vmax.xlane.f32.xlu0 %v882
        %v884 = vpop.xlane.xlu0 %883
        %v885 = vmax.f32 %v836, %v838
        %886 = vmax.xlane.f32.xlu0 %v885
        %v887 = vpop.xlane.xlu0 %886
        %v888 = vsub.f32 %v762, %v842
        %v889 = vsub.f32 %v764, %v842
        %v890 = vsub.f32 %v766, %v845
        %v891 = vsub.f32 %v768, %v845
        %v892 = vsub.f32 %v772, %v848
        %v893 = vsub.f32 %v774, %v848
        %v894 = vsub.f32 %v776, %v851
        %v895 = vsub.f32 %v778, %v851
        %v896 = vsub.f32 %v782, %v854
        %v897 = vsub.f32 %v784, %v854
        %v898 = vsub.f32 %v786, %v857
        %v899 = vsub.f32 %v788, %v857
        %v900 = vsub.f32 %v792, %v860
        %v901 = vsub.f32 %v794, %v860
        %v902 = vsub.f32 %v796, %v863
        %v903 = vsub.f32 %v798, %v863
        %v904 = vsub.f32 %v802, %v866
        %v905 = vsub.f32 %v804, %v866
        %v906 = vsub.f32 %v806, %v869
        %v907 = vsub.f32 %v808, %v869
        %v908 = vsub.f32 %v812, %v872
        %v909 = vsub.f32 %v814, %v872
        %v910 = vsub.f32 %v816, %v875
        %v911 = vsub.f32 %v818, %v875
        %v912 = vsub.f32 %v822, %v878
        %v913 = vsub.f32 %v824, %v878
        %v914 = vsub.f32 %v826, %v881
        %v915 = vsub.f32 %v828, %v881
        %v916 = vsub.f32 %v832, %v884
        %v917 = vsub.f32 %v834, %v884
        %v918 = vsub.f32 %v836, %v887
        %v919 = vsub.f32 %v838, %v887
        %v920 = vmul.f32 %v888, 1.442695
        %v921 = vpow.pop %v920
        %v922 = vmul.f32 %v889, 1.442695
        %v923 = vpow.pop %v922
        %v924 = vmul.f32 %v890, 1.442695
        %v925 = vpow.pop %v924
        %v926 = vmul.f32 %v891, 1.442695
        %v927 = vpow.pop %v926
        %v928 = vmul.f32 %v892, 1.442695
        %v929 = vpow.pop %v928
        %v930 = vmul.f32 %v893, 1.442695
        %v931 = vpow.pop %v930
        %v932 = vmul.f32 %v894, 1.442695
        %v933 = vpow.pop %v932
        %v934 = vmul.f32 %v895, 1.442695
        %v935 = vpow.pop %v934
        %v936 = vmul.f32 %v896, 1.442695
        %v937 = vpow.pop %v936
        %v938 = vmul.f32 %v897, 1.442695
        %v939 = vpow.pop %v938
        %v940 = vmul.f32 %v898, 1.442695
        %v941 = vpow.pop %v940
        %v942 = vmul.f32 %v899, 1.442695
        %v943 = vpow.pop %v942
        %v944 = vmul.f32 %v900, 1.442695
        %v945 = vpow.pop %v944
        %v946 = vmul.f32 %v901, 1.442695
        %v947 = vpow.pop %v946
        %v948 = vmul.f32 %v902, 1.442695
        %v949 = vpow.pop %v948
        %v950 = vmul.f32 %v903, 1.442695
        %v951 = vpow.pop %v950
        %v952 = vmul.f32 %v904, 1.442695
        %v953 = vpow.pop %v952
        %v954 = vmul.f32 %v905, 1.442695
        %v955 = vpow.pop %v954
        %v956 = vmul.f32 %v906, 1.442695
        %v957 = vpow.pop %v956
        %v958 = vmul.f32 %v907, 1.442695
        %v959 = vpow.pop %v958
        %v960 = vmul.f32 %v908, 1.442695
        %v961 = vpow.pop %v960
        %v962 = vmul.f32 %v909, 1.442695
        %v963 = vpow.pop %v962
        %v964 = vmul.f32 %v910, 1.442695
        %v965 = vpow.pop %v964
        %v966 = vmul.f32 %v911, 1.442695
        %v967 = vpow.pop %v966
        %v968 = vmul.f32 %v912, 1.442695
        %v969 = vpow.pop %v968
        %v970 = vmul.f32 %v913, 1.442695
        %v971 = vpow.pop %v970
        %v972 = vmul.f32 %v914, 1.442695
        %v973 = vpow.pop %v972
        %v974 = vmul.f32 %v915, 1.442695
        %v975 = vpow.pop %v974
        %v976 = vmul.f32 %v916, 1.442695
        %v977 = vpow.pop %v976
        %v978 = vmul.f32 %v917, 1.442695
        %v979 = vpow.pop %v978
        %v980 = vmul.f32 %v918, 1.442695
        %v981 = vpow.pop %v980
        %v982 = vmul.f32 %v919, 1.442695
        %v983 = vpow.pop %v982
        %v984 = vadd.f32 %v921, %v923
        %985 = vadd.xlane.f32.xlu0 %v984
        %v986 = vpop.xlane.xlu0 %985
        %v987 = vadd.f32 %v925, %v927
        %988 = vadd.xlane.f32.xlu0 %v987
        %v989 = vpop.xlane.xlu0 %988
        %v990 = vadd.f32 %v929, %v931
        %991 = vadd.xlane.f32.xlu0 %v990
        %v992 = vpop.xlane.xlu0 %991
        %v993 = vadd.f32 %v933, %v935
        %994 = vadd.xlane.f32.xlu0 %v993
        %v995 = vpop.xlane.xlu0 %994
        %v996 = vadd.f32 %v937, %v939
        %997 = vadd.xlane.f32.xlu0 %v996
        %v998 = vpop.xlane.xlu0 %997
        %v999 = vadd.f32 %v941, %v943
        %1000 = vadd.xlane.f32.xlu0 %v999
        %v1001 = vpop.xlane.xlu0 %1000
        %v1002 = vadd.f32 %v945, %v947
        %1003 = vadd.xlane.f32.xlu0 %v1002
        %v1004 = vpop.xlane.xlu0 %1003
        %v1005 = vadd.f32 %v949, %v951
        %1006 = vadd.xlane.f32.xlu0 %v1005
        %v1007 = vpop.xlane.xlu0 %1006
        %v1008 = vadd.f32 %v953, %v955
        %1009 = vadd.xlane.f32.xlu0 %v1008
        %v1010 = vpop.xlane.xlu0 %1009
        %v1011 = vadd.f32 %v957, %v959
        %1012 = vadd.xlane.f32.xlu0 %v1011
        %v1013 = vpop.xlane.xlu0 %1012
        %v1014 = vadd.f32 %v961, %v963
        %1015 = vadd.xlane.f32.xlu0 %v1014
        %v1016 = vpop.xlane.xlu0 %1015
        %v1017 = vadd.f32 %v965, %v967
        %1018 = vadd.xlane.f32.xlu0 %v1017
        %v1019 = vpop.xlane.xlu0 %1018
        %v1020 = vadd.f32 %v969, %v971
        %1021 = vadd.xlane.f32.xlu0 %v1020
        %v1022 = vpop.xlane.xlu0 %1021
        %v1023 = vadd.f32 %v973, %v975
        %1024 = vadd.xlane.f32.xlu0 %v1023
        %v1025 = vpop.xlane.xlu0 %1024
        %v1026 = vadd.f32 %v977, %v979
        %1027 = vadd.xlane.f32.xlu0 %v1026
        %v1028 = vpop.xlane.xlu0 %1027
        %v1029 = vadd.f32 %v981, %v983
        %1030 = vadd.xlane.f32.xlu0 %v1029
        %v1031 = vpop.xlane.xlu0 %1030
        %v1032 = vrcp.pop %v986
        %v1033 = vrcp.pop %v989
        %v1034 = vrcp.pop %v992
        %v1035 = vrcp.pop %v995
        %v1036 = vrcp.pop %v998
        %v1037 = vrcp.pop %v1001
        %v1038 = vrcp.pop %v1004
        %v1039 = vrcp.pop %v1007
        %v1040 = vrcp.pop %v1010
        %v1041 = vrcp.pop %v1013
        %v1042 = vrcp.pop %v1016
        %v1043 = vrcp.pop %v1019
        %v1044 = vrcp.pop %v1022
        %v1045 = vrcp.pop %v1025
        %v1046 = vrcp.pop %v1028
        %v1047 = vrcp.pop %v1031
        %v1048 = vmul.f32 %v921, %v1032
        %v1049 = vmul.f32 %v923, %v1032
        %v1050 = vmul.f32 %v925, %v1033
        %v1051 = vmul.f32 %v927, %v1033
        %v1052 = vmul.f32 %v929, %v1034
        %v1053 = vmul.f32 %v931, %v1034
        %v1054 = vmul.f32 %v933, %v1035
        %v1055 = vmul.f32 %v935, %v1035
        %v1056 = vmul.f32 %v937, %v1036
        %v1057 = vmul.f32 %v939, %v1036
        %v1058 = vmul.f32 %v941, %v1037
        %v1059 = vmul.f32 %v943, %v1037
        %v1060 = vmul.f32 %v945, %v1038
        %v1061 = vmul.f32 %v947, %v1038
        %v1062 = vmul.f32 %v949, %v1039
        %v1063 = vmul.f32 %v951, %v1039
        %v1064 = vmul.f32 %v953, %v1040
        %v1065 = vmul.f32 %v955, %v1040
        %v1066 = vmul.f32 %v957, %v1041
        %v1067 = vmul.f32 %v959, %v1041
        %v1068 = vmul.f32 %v961, %v1042
        %v1069 = vmul.f32 %v963, %v1042
        %v1070 = vmul.f32 %v965, %v1043
        %v1071 = vmul.f32 %v967, %v1043
        %v1072 = vmul.f32 %v969, %v1044
        %v1073 = vmul.f32 %v971, %v1044
        %v1074 = vmul.f32 %v973, %v1045
        %v1075 = vmul.f32 %v975, %v1045
        %v1076 = vmul.f32 %v977, %v1046
        %v1077 = vmul.f32 %v979, %v1046
        %v1078 = vmul.f32 %v981, %v1047
        %v1079 = vmul.f32 %v983, %v1047
        %v1080 = vpack.c.bf16 %v1050, %v1048
        %v1081 = vpack.c.bf16 %v1051, %v1049
        %v1082 = vpack.c.bf16 %v1054, %v1052
        %v1083 = vpack.c.bf16 %v1055, %v1053
        %v1084 = vpack.c.bf16 %v1058, %v1056
        %v1085 = vpack.c.bf16 %v1059, %v1057
        %v1086 = vpack.c.bf16 %v1062, %v1060
        %v1087 = vpack.c.bf16 %v1063, %v1061
        %v1088 = vpack.c.bf16 %v1066, %v1064
        %v1089 = vpack.c.bf16 %v1067, %v1065
        %v1090 = vpack.c.bf16 %v1070, %v1068
        %v1091 = vpack.c.bf16 %v1071, %v1069
        %v1092 = vpack.c.bf16 %v1074, %v1072
        %v1093 = vpack.c.bf16 %v1075, %v1073
        %v1094 = vpack.c.bf16 %v1078, %v1076
        %v1095 = vpack.c.bf16 %v1079, %v1077
        %v1096 = vld [vmem:[#allocation3] sm:$0xff]
        %v1097 = vld [vmem:[#allocation3 + $0x8] sm:$0xff]
        %v1098 = vld [vmem:[#allocation3 + $0x10] sm:$0xff]
        %v1099 = vld [vmem:[#allocation3 + $0x18] sm:$0xff]
        %v1104 = vunpack.c.l.b16 %v1096
        %v1105 = vunpack.c.h.b16 %v1096
        %v1106 = vunpack.c.l.b16 %v1097
        %v1107 = vunpack.c.h.b16 %v1097
        %v1108 = vunpack.c.l.b16 %v1098
        %v1109 = vunpack.c.h.b16 %v1098
        %v1110 = vunpack.c.l.b16 %v1099
        %v1111 = vunpack.c.h.b16 %v1099
        %v1112 = vpack.c.b16 %v1106, %v1104
        %v1113 = vpack.c.b16 %v1107, %v1105
        %v1114 = vpack.c.b16 %v1110, %v1108
        %v1115 = vpack.c.b16 %v1111, %v1109
        %1120 = vmatprep.subr.bf16.mxu0 %v1095
        %1121 = vmatpush1.bf16.xpose.msra.mxu0 %v1094
        %1122 = vmatprep.subr.bf16.mxu0 %v1093
        %1123 = vmatpush1.bf16.xpose.msra.mxu0 %v1092
        %1124 = vmatprep.subr.bf16.mxu0 %v1091
        %1125 = vmatpush1.bf16.xpose.msra.mxu0 %v1090
        %1126 = vmatprep.subr.bf16.mxu0 %v1089
        %1127 = vmatpush1.bf16.xpose.msra.mxu0 %v1088
        %1128 = vmatprep.subr.bf16.mxu0 %v1087
        %1129 = vmatpush1.bf16.xpose.msra.mxu0 %v1086
        %1130 = vmatprep.subr.bf16.mxu0 %v1085
        %1131 = vmatpush1.bf16.xpose.msra.mxu0 %v1084
        %1132 = vmatprep.subr.bf16.mxu0 %v1083
        %1133 = vmatpush1.bf16.xpose.msra.mxu0 %v1082
        %1134 = vmatprep.subr.bf16.mxu0 %v1081
        %1135 = vmatpush1.bf16.xpose.msra.mxu0 %v1080
        %1136 = vmatprep.subr.bf16.mxu0 0
        %1137 = vmatpush2.bf16.xpose.msra.mxu0 0
        %1138 = vmatprep.subr.bf16.mxu0 0
        %1139 = vmatpush2.bf16.xpose.msra.mxu0 0
        %1140 = vmatprep.subr.bf16.mxu0 0
        %1141 = vmatpush2.bf16.xpose.msra.mxu0 0
        %1142 = vmatprep.subr.bf16.mxu0 0
        %1143 = vmatpush2.bf16.xpose.msra.mxu0 0
        %1144 = vmatprep.subr.bf16.mxu0 0
        %1145 = vmatpush2.bf16.xpose.msra.mxu0 0
        %1146 = vmatprep.subr.bf16.mxu0 0
        %1147 = vmatpush2.bf16.xpose.msra.mxu0 0
        %1148 = vmatprep.subr.bf16.mxu0 0
        %1149 = vmatpush2.bf16.xpose.msra.mxu0 0
        %1150 = vmatprep.subr.bf16.mxu0 0
        %1151 = vmatpush2.bf16.xpose.msra.mxu0 0
        %1152 = vmatprep.mubr.bf16.mxu0 %v1113
        %1153 = vmatmul.mubr.bf16.gmra.mxu0 %v1112
        %v1154 = vpop.f32.mrf.mxu0
        %v1155 = vadd.f32 0.0, %v1154
        %v1156 = vpop.f32.mrf.mxu0
        %v1157 = vpop.f32.mrf.mxu0
        %v1158 = vadd.f32 0.0, %v1157
        %v1159 = vpop.f32.mrf.mxu0
        %1160 = vmatprep.mubr.bf16.mxu0 %v1115
        %1161 = vmatmul.mubr.bf16.gmra.mxu0 %v1114
        %v1162 = vpop.f32.mrf.mxu0
        %v1163 = vadd.f32 0.0, %v1162
        %v1164 = vpop.f32.mrf.mxu0
        %v1165 = vpop.f32.mrf.mxu0
        %v1166 = vadd.f32 0.0, %v1165
        %v1167 = vpop.f32.mrf.mxu0
        %1168 = vdwg.mxu0
        %s1169 = sld [smem:[#allocation4]]
        %v1170 = vstv %s1169
        %v1171 = vmul.f32 %v1170, %v1155
        %v1172 = vmul.f32 %v1170, %v1158
        %v1173 = vmul.f32 %v1170, %v1163
        %v1174 = vmul.f32 %v1170, %v1166
        %v1175 = vadd.f32 %v1171, %v610
        %v1176 = vadd.f32 %v1172, %v611
        %v1177 = vadd.f32 %v1173, %v612
        %v1178 = vadd.f32 %v1174, %v613
        %1179 = vst [vmem:[%s408] sm:$0xff] %v1175
        %1180 = vst [vmem:[%s408 + $0x8] sm:$0xff] %v1176
        %1181 = vst [vmem:[%s408 + $0x10] sm:$0xff] %v1177
        %1182 = vst [vmem:[%s408 + $0x18] sm:$0xff] %v1178
        %s1183 = sand.u32 %s253, 1
        %s1184 = scalar_lea.sflag [#allocation7], %s1183
        %s1185 = sand.u32 %s253, 1
        %s1186 = smul.addr %s1185, 32
        %s1187 = scalar_lea.vmem [#allocation10], %s1186
        // Predicated region
        $region69: #{tpu_custom_call.1} parent=55 // pred_check
          %p1188 = pneg %p263
        $region70: #{tpu_custom_call.1} parent=55 // pred_check_branch
          %1190 = sbr.rel (%p1188) target = $region72
        $region71: #{tpu_custom_call.1} parent=55 // pred_region
          %s1192 = ssub.s32 512, 512
          %1193 = vsyncadd %s1184, %s1192
          %s1194 = smul.addr %s34, 8
          %s1195 = sadd.s32 %s35, %s1194
          %s1196 = smul.addr %s1195, 128
          %s1197 = scalar_lea.hbm %s9, %s1196
          %s1198 = sshll.u32 %s1187, 4
          %s1199 = int_to_ptr.vmem [resolvable:$true] %s1198
          %1204 = dma.vmem_to_hbm [thread:$0]  %s1199, 512, %s1197, %s1184, 128, 256, 8
        $region72: #{tpu_custom_call.1} parent=55 // pred_fallthru
          _
      $region56: #{tpu_custom_call.1} parent=5 // pred_fallthru
        _
      %p1205 = scmp.le.s32.totalorder 2, %s25
      // Predicated region
      $region73: #{tpu_custom_call.1} parent=5 // pred_check
        %p1206 = pneg %p1205
      $region74: #{tpu_custom_call.1} parent=5 // pred_check_branch
        %1208 = sbr.rel (%p1206) target = $region76
      $region75: #{tpu_custom_call.1} parent=5 // pred_region
        %s1209 = ssub.s32 %s25, 2
        // Predicated region
        $region77: #{tpu_custom_call.1} parent=75 // pred_check
          %p1210 = pneg %p269
        $region78: #{tpu_custom_call.1} parent=75 // pred_check_branch
          %1212 = sbr.rel (%p1210) target = $region80
        $region79: #{tpu_custom_call.1} parent=75 // pred_region
          %s1213 = sand.u32 %s254, 1
          %s1214 = scalar_lea.sflag [#allocation7], %s1213
          %s1215 = sand.u32 %s254, 1
          %s1216 = smul.addr %s1215, 32
          %s1217 = scalar_lea.vmem [#allocation10], %s1216
          %1218 = dma.done %s1214, 512
        $region80: #{tpu_custom_call.1} parent=75 // pred_fallthru
          _
      $region76: #{tpu_custom_call.1} parent=5 // pred_fallthru
        _
    $region6: #{tpu_custom_call.1} parent=1 // loop_footer
      %s29 = sadd.s32 1, %s25
    $region7: #{tpu_custom_call.1} parent=1 // loop_footer_branch
      %24 = sbr.rel target = $region3
    $region8: #{tpu_custom_call.1} parent=1 // loop_exit
      _
    %1219 = vsyncpa [#allocation6], 1
    %s1220 = scalar_lea.sflag [#allocation6], 1
    %1221 = vsyncpa %s1220, 1
    %1222 = vsyncpa [#allocation9], 1
    %s1223 = scalar_lea.sflag [#allocation9], 1
    %1224 = vsyncpa %s1223, 1
    %1225 = vsyncpa [#allocation7], 1
    %s1226 = scalar_lea.sflag [#allocation7], 1
    %1227 = vsyncpa %s1226, 1

</llo_original>
